<compile_context>
chip_gen: v7x
topology: tpu7x:2x2x1
jax: 0.10.0
libtpu: 0.0.40
codegen_flags: <defaults>
</compile_context>

<pallas_src>
import functools

import jax
import jax.numpy as jnp
from jax import lax
from jax.experimental import pallas as pl
from jax.experimental.pallas import tpu as pltpu

EPS = 1e-5
# 4 block streams (x_re, x_im, o_re, o_im) x double-buffer + ~2 block-sized in-kernel
# temporaries (x*x product / output expression) per channel-tile, in f32.
_LIVE_FACTOR = 10


# ----------------------------------------------------------------------------- kernels
def _cplx_bn_fused_kernel(xr_ref, xi_ref, gr_ref, br_ref, gi_ref, bi_ref,
                          or_ref, oi_ref, *, inv_count):
    """Single-pass BN over a (N, tc, HWp) block for each plane (full N*HW per channel)."""
    def bn(x_ref, g_ref, b_ref, o_ref):
        x = x_ref[...]                                                      # (N, tc, HWp)
        # One-pass stats: lane reduction (XLU) then cheap batch-axis reduce.
        s = jnp.sum(jnp.sum(x, axis=2, keepdims=True), axis=0, keepdims=True)        # (1, tc, 1)
        ss = jnp.sum(jnp.sum(x * x, axis=2, keepdims=True), axis=0, keepdims=True)   # (1, tc, 1)
        mean = s * inv_count
        var = jnp.maximum(ss * inv_count - mean * mean, 0.0)               # biased var
        scale = lax.rsqrt(var + EPS) * g_ref[...]                          # EUP rsqrt
        shift = b_ref[...] - mean * scale
        o_ref[...] = (x * scale + shift).astype(o_ref.dtype)               # 2 VPU ops/elt

    bn(xr_ref, gr_ref, br_ref, or_ref)
    bn(xi_ref, gi_ref, bi_ref, oi_ref)


def _cplx_bn_stats_kernel(xr_ref, xi_ref, sr_ref, ssr_ref, si_ref, ssi_ref):
    """Fallback pass 1: accumulate per-channel sum / sumsq over spatial tiles."""
    @pl.when(pl.program_id(1) == 0)
    def _init():
        sr_ref[...] = jnp.zeros_like(sr_ref)
        ssr_ref[...] = jnp.zeros_like(ssr_ref)
        si_ref[...] = jnp.zeros_like(si_ref)
        ssi_ref[...] = jnp.zeros_like(ssi_ref)

    def acc(x_ref, s_ref, ss_ref):
        x = x_ref[...]
        s_ref[...] += jnp.sum(jnp.sum(x, axis=2, keepdims=True), axis=0, keepdims=True)
        ss_ref[...] += jnp.sum(jnp.sum(x * x, axis=2, keepdims=True), axis=0, keepdims=True)

    acc(xr_ref, sr_ref, ssr_ref)
    acc(xi_ref, si_ref, ssi_ref)


def _cplx_bn_apply_kernel(xr_ref, xi_ref, scr_ref, shr_ref, sci_ref, shi_ref,
                          or_ref, oi_ref):
    """Fallback pass 2: y = x * scale + shift with precomputed per-channel scale/shift."""
    or_ref[...] = (xr_ref[...] * scr_ref[...] + shr_ref[...]).astype(or_ref.dtype)
    oi_ref[...] = (xi_ref[...] * sci_ref[...] + shi_ref[...]).astype(oi_ref.dtype)


# ----------------------------------------------------------------------------- helpers
def _round_up(x, m):
    return (x + m - 1) // m * m


def _vmem_capacity_bytes():
    try:
        return int(pltpu.get_tpu_info().vmem_capacity_bytes)
    except Exception:
        return 64 << 20   # conservative: v7x per-TensorCore VMEM


def _channel_tile_candidates(C):
    # (8,128) rule: second-to-last block dim must be a multiple of 8 or the full dim.
    return [d for d in range(1, C + 1) if C % d == 0 and (d == C or d % 8 == 0)]


def _pick_fused_tc(C, per_channel_live, budget):
    cands = _channel_tile_candidates(C)
    fitting = [d for d in cands if d * per_channel_live <= budget]
    if not fitting:
        return None                                   # needs spatial-tiling fallback
    multi = [d for d in fitting if d < C]             # >=2 grid steps (v7x megacore)
    if multi:
        even = [d for d in multi if (C // d) % 2 == 0]
        return max(even) if even else max(multi)
    return max(fitting)


def _pick_spatial_tiles(C, N, HWp, budget):
    tc = min(_channel_tile_candidates(C))
    m = HWp // 128
    ts_cands = [128 * d for d in range(1, m + 1) if m % d == 0]
    fitting = [t for t in ts_cands if _LIVE_FACTOR * N * tc * t * 4 <= budget]
    if not fitting:
        # TODO(synk): batch-axis tiling for extreme N is not implemented.
        raise NotImplementedError(
            "CplxBatchNorm2d Pallas kernel: a single (N, tc, 128) tile exceeds the "
            "VMEM budget; batch-axis tiling is not implemented.")
    return tc, max(fitting)


# ----------------------------------------------------------------------------- paths
def _fused_path(xr3, xi3, g_re, b_re, g_im, b_im, tc, inv_count, vmem_limit):
    N, C, HWp = xr3.shape
    x_spec = pl.BlockSpec((N, tc, HWp), lambda c: (0, c, 0))
    p_spec = pl.BlockSpec((1, tc, 1), lambda c: (0, c, 0))
    kernel = functools.partial(_cplx_bn_fused_kernel, inv_count=inv_count)
    return pl.pallas_call(
        kernel,
        out_shape=(jax.ShapeDtypeStruct((N, C, HWp), jnp.float32),
                   jax.ShapeDtypeStruct((N, C, HWp), jnp.float32)),
        grid_spec=pltpu.PrefetchScalarGridSpec(
            num_scalar_prefetch=0,
            grid=(C // tc,),
            in_specs=[x_spec, x_spec, p_spec, p_spec, p_spec, p_spec],
            out_specs=[x_spec, x_spec],
        ),
        compiler_params=pltpu.CompilerParams(
            dimension_semantics=("parallel",),
            vmem_limit_bytes=vmem_limit),
    )(xr3, xi3, g_re, b_re, g_im, b_im)


def _tiled_path(xr3, xi3, g_re, b_re, g_im, b_im, tc, ts, inv_count, vmem_limit):
    N, C, HWp = xr3.shape
    n_s = HWp // ts
    x_spec = pl.BlockSpec((N, tc, ts), lambda c, s: (0, c, s))
    stat_spec = pl.BlockSpec((1, tc, 1), lambda c, s: (0, c, 0))

    stat_shape = jax.ShapeDtypeStruct((1, C, 1), jnp.float32)
    s_re, ss_re, s_im, ss_im = pl.pallas_call(
        _cplx_bn_stats_kernel,
        out_shape=(stat_shape,) * 4,
        grid_spec=pltpu.PrefetchScalarGridSpec(
            num_scalar_prefetch=0,
            grid=(C // tc, n_s),
            in_specs=[x_spec, x_spec],
            out_specs=[stat_spec] * 4,
        ),
        compiler_params=pltpu.CompilerParams(
            dimension_semantics=("parallel", "arbitrary"),
            vmem_limit_bytes=vmem_limit),
    )(xr3, xi3)

    def fold(s, ss, g, b):
        mean = s * inv_count
        var = jnp.maximum(ss * inv_count - mean * mean, 0.0)
        scale = lax.rsqrt(var + EPS) * g
        shift = b - mean * scale
        return scale, shift

    sc_re, sh_re = fold(s_re, ss_re, g_re, b_re)   # tiny (1, C, 1) arrays
    sc_im, sh_im = fold(s_im, ss_im, g_im, b_im)

    return pl.pallas_call(
        _cplx_bn_apply_kernel,
        out_shape=(jax.ShapeDtypeStruct((N, C, HWp), jnp.float32),
                   jax.ShapeDtypeStruct((N, C, HWp), jnp.float32)),
        grid_spec=pltpu.PrefetchScalarGridSpec(
            num_scalar_prefetch=0,
            grid=(C // tc, n_s),
            in_specs=[x_spec, x_spec, stat_spec, stat_spec, stat_spec, stat_spec],
            out_specs=[x_spec, x_spec],
        ),
        compiler_params=pltpu.CompilerParams(
            dimension_semantics=("parallel", "parallel"),
            vmem_limit_bytes=vmem_limit),
    )(xr3, xi3, sc_re, sh_re, sc_im, sh_im)


# ----------------------------------------------------------------------------- wrappers
def cplx_batchnorm2d_planar(x_re, x_im, gamma_re, beta_re, gamma_im, beta_im,
                            *, vmem_budget_bytes=None):
    """Fast path: separate real/imag planes in, separate planes out (no extra HBM passes).
    x_re, x_im: (N, C, H, W) float arrays."""
    assert x_re.shape == x_im.shape
    N, C, H, W = x_re.shape
    HW = H * W
    HWp = _round_up(HW, 128)   # lane-dense last dim -> unmasked vector stores

    xr3 = x_re.astype(jnp.float32).reshape(N, C, HW)   # free contiguous views
    xi3 = x_im.astype(jnp.float32).reshape(N, C, HW)
    if HWp != HW:
        # Zero pad is safe with one-pass sum/sumsq stats + unpadded inv_count.
        pad = ((0, 0), (0, 0), (0, HWp - HW))
        xr3 = jnp.pad(xr3, pad)
        xi3 = jnp.pad(xi3, pad)

    g_re = gamma_re.astype(jnp.float32).reshape(1, C, 1)
    b_re = beta_re.astype(jnp.float32).reshape(1, C, 1)
    g_im = gamma_im.astype(jnp.float32).reshape(1, C, 1)
    b_im = beta_im.astype(jnp.float32).reshape(1, C, 1)

    inv_count = 1.0 / float(N * HW)                    # unpadded count, biased variance

    cap = _vmem_capacity_bytes()                       # 128 MiB v5e/v6e, 64 MiB v7x/TC
    vmem_limit = int(cap * 0.75)
    budget = vmem_budget_bytes if vmem_budget_bytes is not None else int(vmem_limit * 0.9)

    per_channel_live = _LIVE_FACTOR * N * HWp * 4
    tc = _pick_fused_tc(C, per_channel_live, budget)
    if tc is not None:
        o_re3, o_im3 = _fused_path(xr3, xi3, g_re, b_re, g_im, b_im,
                                   tc, inv_count, vmem_limit)
    else:
        tc2, ts = _pick_spatial_tiles(C, N, HWp, budget)
        o_re3, o_im3 = _tiled_path(xr3, xi3, g_re, b_re, g_im, b_im,
                                   tc2, ts, inv_count, vmem_limit)

    if HWp != HW:
        o_re3 = o_re3[:, :, :HW]
        o_im3 = o_im3[:, :, :HW]
    out_re = o_re3.reshape(N, C, H, W).astype(x_re.dtype)
    out_im = o_im3.reshape(N, C, H, W).astype(x_im.dtype)
    return out_re, out_im


def cplx_batchnorm2d(x, gamma_re, beta_re, gamma_im, beta_im):
    """Module-parity wrapper: complex64 (N, C, H, W) in, complex64 out.
    NOTE: Mosaic has no complex dtype and lax.bitcast_convert_type does not support
    complex, so the real/imag split and the final recombine are each full HBM passes.
    Performance-critical callers should use cplx_batchnorm2d_planar end-to-end."""
    out_re, out_im = cplx_batchnorm2d_planar(
        jnp.real(x), jnp.imag(x), gamma_re, beta_re, gamma_im, beta_im)
    return lax.complex(out_re, out_im)


# ----------------------------------------------------------------------------- reference
def _reference_planar(x_re, x_im, gamma_re, beta_re, gamma_im, beta_im):
    def bn(v, g, b):
        mean = jnp.mean(v, axis=(0, 2, 3), keepdims=True)
        var = jnp.mean((v - mean) ** 2, axis=(0, 2, 3), keepdims=True)
        vhat = (v - mean) * lax.rsqrt(var + EPS)
        return vhat * g[None, :, None, None] + b[None, :, None, None]
    return (bn(x_re.astype(jnp.float32), gamma_re, beta_re),
            bn(x_im.astype(jnp.float32), gamma_im, beta_im))


if __name__ == "__main__":
    key = jax.random.PRNGKey(0)
    k1, k2, k3, k4, k5, k6 = jax.random.split(key, 6)

    N, C, H, W = 2, 4, 16, 16
    x_re = jax.random.normal(k1, (N, C, H, W), dtype=jnp.float32)
    x_im = jax.random.normal(k2, (N, C, H, W), dtype=jnp.float32)

    # nn.BatchNorm2d default init is weight=1, bias=0; random affine exercises the path.
    gamma_re = 1.0 + 0.1 * jax.random.normal(k3, (C,), dtype=jnp.float32)
    beta_re = 0.1 * jax.random.normal(k4, (C,), dtype=jnp.float32)
    gamma_im = 1.0 + 0.1 * jax.random.normal(k5, (C,), dtype=jnp.float32)
    beta_im = 0.1 * jax.random.normal(k6, (C,), dtype=jnp.float32)

    ref_re, ref_im = _reference_planar(x_re, x_im, gamma_re, beta_re, gamma_im, beta_im)

    # 1) Fast planar path (fused single-kernel).
    out_re, out_im = cplx_batchnorm2d_planar(
        x_re, x_im, gamma_re, beta_re, gamma_im, beta_im)
    out_re, out_im = jax.block_until_ready((out_re, out_im))
    assert jnp.allclose(out_re, ref_re, atol=2e-5, rtol=2e-5)
    assert jnp.allclose(out_im, ref_im, atol=2e-5, rtol=2e-5)

    # 2) Spatial-tiled fallback (forced via tiny budget) — exercises stats + apply kernels.
    t_re, t_im = cplx_batchnorm2d_planar(
        x_re, x_im, gamma_re, beta_re, gamma_im, beta_im, vmem_budget_bytes=48 << 10)
    t_re, t_im = jax.block_until_ready((t_re, t_im))
    assert jnp.allclose(t_re, ref_re, atol=2e-5, rtol=2e-5)
    assert jnp.allclose(t_im, ref_im, atol=2e-5, rtol=2e-5)

    # 3) Module-parity complex wrapper.
    x = lax.complex(x_re, x_im)
    out = jax.block_until_ready(cplx_batchnorm2d(x, gamma_re, beta_re, gamma_im, beta_im))
    assert out.shape == (N, C, H, W) and out.dtype == jnp.complex64
    assert jnp.allclose(jnp.real(out), ref_re, atol=2e-5, rtol=2e-5)
    assert jnp.allclose(jnp.imag(out), ref_im, atol=2e-5, rtol=2e-5)

    print("KERNEL_OK")
</pallas_src>

<mosaic_0001>
module attributes {stable_mosaic.version = 11 : i64} {
  func.func @_cplx_bn_fused_kernel(%arg0: i32, %arg1: memref<2x4x256xf32, #tpu.memory_space<vmem>>, %arg2: memref<2x4x256xf32, #tpu.memory_space<vmem>>, %arg3: memref<1x4x1xf32, #tpu.memory_space<vmem>>, %arg4: memref<1x4x1xf32, #tpu.memory_space<vmem>>, %arg5: memref<1x4x1xf32, #tpu.memory_space<vmem>>, %arg6: memref<1x4x1xf32, #tpu.memory_space<vmem>>, %arg7: memref<2x4x256xf32, #tpu.memory_space<vmem>>, %arg8: memref<2x4x256xf32, #tpu.memory_space<vmem>>) attributes {dimension_semantics = [#tpu.dimension_semantics<parallel>], iteration_bounds = array<i64: 1>, scalar_prefetch = 0 : i64, scratch_operands = 0 : i64, tpu.core_type = #tpu.core_type<tc>, window_params = [{transform_indices = @transform_0, window_bounds = array<i64: 2, 4, 256>}, {transform_indices = @transform_1, window_bounds = array<i64: 2, 4, 256>}, {transform_indices = @transform_2, window_bounds = array<i64: 1, 4, 1>}, {transform_indices = @transform_3, window_bounds = array<i64: 1, 4, 1>}, {transform_indices = @transform_4, window_bounds = array<i64: 1, 4, 1>}, {transform_indices = @transform_5, window_bounds = array<i64: 1, 4, 1>}, {transform_indices = @transform_6, window_bounds = array<i64: 2, 4, 256>}, {transform_indices = @transform_7, window_bounds = array<i64: 2, 4, 256>}]} {
    %c0 = arith.constant 0 : index
    %c0_0 = arith.constant 0 : index
    %c0_1 = arith.constant 0 : index
    %0 = vector.load %arg1[%c0, %c0_0, %c0_1] : memref<2x4x256xf32, #tpu.memory_space<vmem>>, vector<2x4x256xf32>
    %cst = arith.constant dense<0.000000e+00> : vector<2x4xf32>
    %1 = vector.multi_reduction <add>, %0, %cst [2] : vector<2x4x256xf32> to vector<2x4xf32>
    %2 = vector.shape_cast %1 : vector<2x4xf32> to vector<2x4x1xf32>
    %cst_2 = arith.constant dense<0.000000e+00> : vector<4x1xf32>
    %3 = vector.multi_reduction <add>, %2, %cst_2 [0] : vector<2x4x1xf32> to vector<4x1xf32>
    %4 = vector.shape_cast %3 : vector<4x1xf32> to vector<1x4x1xf32>
    %5 = arith.mulf %0, %0 : vector<2x4x256xf32>
    %cst_3 = arith.constant dense<0.000000e+00> : vector<2x4xf32>
    %6 = vector.multi_reduction <add>, %5, %cst_3 [2] : vector<2x4x256xf32> to vector<2x4xf32>
    %7 = vector.shape_cast %6 : vector<2x4xf32> to vector<2x4x1xf32>
    %cst_4 = arith.constant dense<0.000000e+00> : vector<4x1xf32>
    %8 = vector.multi_reduction <add>, %7, %cst_4 [0] : vector<2x4x1xf32> to vector<4x1xf32>
    %9 = vector.shape_cast %8 : vector<4x1xf32> to vector<1x4x1xf32>
    %cst_5 = arith.constant 0.001953125 : f32
    %10 = vector.broadcast %cst_5 : f32 to vector<1x4x1xf32>
    %11 = arith.mulf %4, %10 : vector<1x4x1xf32>
    %cst_6 = arith.constant 0.001953125 : f32
    %12 = vector.broadcast %cst_6 : f32 to vector<1x4x1xf32>
    %13 = arith.mulf %9, %12 : vector<1x4x1xf32>
    %14 = arith.mulf %11, %11 : vector<1x4x1xf32>
    %15 = arith.subf %13, %14 : vector<1x4x1xf32>
    %cst_7 = arith.constant 0.000000e+00 : f32
    %16 = vector.broadcast %cst_7 : f32 to vector<1x4x1xf32>
    %17 = arith.maximumf %15, %16 : vector<1x4x1xf32>
    %cst_8 = arith.constant 9.99999974E-6 : f32
    %18 = vector.broadcast %cst_8 : f32 to vector<1x4x1xf32>
    %19 = arith.addf %17, %18 : vector<1x4x1xf32>
    %20 = math.rsqrt %19 : vector<1x4x1xf32>
    %c0_9 = arith.constant 0 : index
    %c0_10 = arith.constant 0 : index
    %c0_11 = arith.constant 0 : index
    %21 = vector.load %arg3[%c0_9, %c0_10, %c0_11] : memref<1x4x1xf32, #tpu.memory_space<vmem>>, vector<1x4x1xf32>
    %22 = arith.mulf %20, %21 : vector<1x4x1xf32>
    %c0_12 = arith.constant 0 : index
    %c0_13 = arith.constant 0 : index
    %c0_14 = arith.constant 0 : index
    %23 = vector.load %arg4[%c0_12, %c0_13, %c0_14] : memref<1x4x1xf32, #tpu.memory_space<vmem>>, vector<1x4x1xf32>
    %24 = arith.mulf %11, %22 : vector<1x4x1xf32>
    %25 = arith.subf %23, %24 : vector<1x4x1xf32>
    %26 = vector.broadcast %22 : vector<1x4x1xf32> to vector<2x4x256xf32>
    %27 = arith.mulf %0, %26 : vector<2x4x256xf32>
    %28 = vector.broadcast %25 : vector<1x4x1xf32> to vector<2x4x256xf32>
    %29 = arith.addf %27, %28 : vector<2x4x256xf32>
    %c0_15 = arith.constant 0 : index
    %c0_16 = arith.constant 0 : index
    %c0_17 = arith.constant 0 : index
    %30 = vector.load %arg7[%c0_15, %c0_16, %c0_17] : memref<2x4x256xf32, #tpu.memory_space<vmem>>, vector<2x4x256xf32>
    tpu.vector_store %arg7[%c0_15, %c0_16, %c0_17], %29 {strides = array<i32>} : memref<2x4x256xf32, #tpu.memory_space<vmem>>, vector<2x4x256xf32>,
    %c0_18 = arith.constant 0 : index
    %c0_19 = arith.constant 0 : index
    %c0_20 = arith.constant 0 : index
    %31 = vector.load %arg2[%c0_18, %c0_19, %c0_20] : memref<2x4x256xf32, #tpu.memory_space<vmem>>, vector<2x4x256xf32>
    %cst_21 = arith.constant dense<0.000000e+00> : vector<2x4xf32>
    %32 = vector.multi_reduction <add>, %31, %cst_21 [2] : vector<2x4x256xf32> to vector<2x4xf32>
    %33 = vector.shape_cast %32 : vector<2x4xf32> to vector<2x4x1xf32>
    %cst_22 = arith.constant dense<0.000000e+00> : vector<4x1xf32>
    %34 = vector.multi_reduction <add>, %33, %cst_22 [0] : vector<2x4x1xf32> to vector<4x1xf32>
    %35 = vector.shape_cast %34 : vector<4x1xf32> to vector<1x4x1xf32>
    %36 = arith.mulf %31, %31 : vector<2x4x256xf32>
    %cst_23 = arith.constant dense<0.000000e+00> : vector<2x4xf32>
    %37 = vector.multi_reduction <add>, %36, %cst_23 [2] : vector<2x4x256xf32> to vector<2x4xf32>
    %38 = vector.shape_cast %37 : vector<2x4xf32> to vector<2x4x1xf32>
    %cst_24 = arith.constant dense<0.000000e+00> : vector<4x1xf32>
    %39 = vector.multi_reduction <add>, %38, %cst_24 [0] : vector<2x4x1xf32> to vector<4x1xf32>
    %40 = vector.shape_cast %39 : vector<4x1xf32> to vector<1x4x1xf32>
    %cst_25 = arith.constant 0.001953125 : f32
    %41 = vector.broadcast %cst_25 : f32 to vector<1x4x1xf32>
    %42 = arith.mulf %35, %41 : vector<1x4x1xf32>
    %cst_26 = arith.constant 0.001953125 : f32
    %43 = vector.broadcast %cst_26 : f32 to vector<1x4x1xf32>
    %44 = arith.mulf %40, %43 : vector<1x4x1xf32>
    %45 = arith.mulf %42, %42 : vector<1x4x1xf32>
    %46 = arith.subf %44, %45 : vector<1x4x1xf32>
    %cst_27 = arith.constant 0.000000e+00 : f32
    %47 = vector.broadcast %cst_27 : f32 to vector<1x4x1xf32>
    %48 = arith.maximumf %46, %47 : vector<1x4x1xf32>
    %cst_28 = arith.constant 9.99999974E-6 : f32
    %49 = vector.broadcast %cst_28 : f32 to vector<1x4x1xf32>
    %50 = arith.addf %48, %49 : vector<1x4x1xf32>
    %51 = math.rsqrt %50 : vector<1x4x1xf32>
    %c0_29 = arith.constant 0 : index
    %c0_30 = arith.constant 0 : index
    %c0_31 = arith.constant 0 : index
    %52 = vector.load %arg5[%c0_29, %c0_30, %c0_31] : memref<1x4x1xf32, #tpu.memory_space<vmem>>, vector<1x4x1xf32>
    %53 = arith.mulf %51, %52 : vector<1x4x1xf32>
    %c0_32 = arith.constant 0 : index
    %c0_33 = arith.constant 0 : index
    %c0_34 = arith.constant 0 : index
    %54 = vector.load %arg6[%c0_32, %c0_33, %c0_34] : memref<1x4x1xf32, #tpu.memory_space<vmem>>, vector<1x4x1xf32>
    %55 = arith.mulf %42, %53 : vector<1x4x1xf32>
    %56 = arith.subf %54, %55 : vector<1x4x1xf32>
    %57 = vector.broadcast %53 : vector<1x4x1xf32> to vector<2x4x256xf32>
    %58 = arith.mulf %31, %57 : vector<2x4x256xf32>
    %59 = vector.broadcast %56 : vector<1x4x1xf32> to vector<2x4x256xf32>
    %60 = arith.addf %58, %59 : vector<2x4x256xf32>
    %c0_35 = arith.constant 0 : index
    %c0_36 = arith.constant 0 : index
    %c0_37 = arith.constant 0 : index
    %61 = vector.load %arg8[%c0_35, %c0_36, %c0_37] : memref<2x4x256xf32, #tpu.memory_space<vmem>>, vector<2x4x256xf32>
    tpu.vector_store %arg8[%c0_35, %c0_36, %c0_37], %60 {strides = array<i32>} : memref<2x4x256xf32, #tpu.memory_space<vmem>>, vector<2x4x256xf32>,
    return
  }
  func.func @transform_0(%arg0: i32) -> (i32, i32, i32) {
    %c0_i32 = arith.constant 0 : i32
    %c0_i32_0 = arith.constant 0 : i32
    %c0_i32_1 = arith.constant 0 : i32
    return %c0_i32, %arg0, %c0_i32_0 : i32, i32, i32
  }
  func.func @transform_1(%arg0: i32) -> (i32, i32, i32) {
    %c0_i32 = arith.constant 0 : i32
    %c0_i32_0 = arith.constant 0 : i32
    %c0_i32_1 = arith.constant 0 : i32
    return %c0_i32, %arg0, %c0_i32_0 : i32, i32, i32
  }
  func.func @transform_2(%arg0: i32) -> (i32, i32, i32) {
    %c0_i32 = arith.constant 0 : i32
    %c0_i32_0 = arith.constant 0 : i32
    %c0_i32_1 = arith.constant 0 : i32
    return %c0_i32, %arg0, %c0_i32_0 : i32, i32, i32
  }
  func.func @transform_3(%arg0: i32) -> (i32, i32, i32) {
    %c0_i32 = arith.constant 0 : i32
    %c0_i32_0 = arith.constant 0 : i32
    %c0_i32_1 = arith.constant 0 : i32
    return %c0_i32, %arg0, %c0_i32_0 : i32, i32, i32
  }
  func.func @transform_4(%arg0: i32) -> (i32, i32, i32) {
    %c0_i32 = arith.constant 0 : i32
    %c0_i32_0 = arith.constant 0 : i32
    %c0_i32_1 = arith.constant 0 : i32
    return %c0_i32, %arg0, %c0_i32_0 : i32, i32, i32
  }
  func.func @transform_5(%arg0: i32) -> (i32, i32, i32) {
    %c0_i32 = arith.constant 0 : i32
    %c0_i32_0 = arith.constant 0 : i32
    %c0_i32_1 = arith.constant 0 : i32
    return %c0_i32, %arg0, %c0_i32_0 : i32, i32, i32
  }
  func.func @transform_6(%arg0: i32) -> (i32, i32, i32) {
    %c0_i32 = arith.constant 0 : i32
    %c0_i32_0 = arith.constant 0 : i32
    %c0_i32_1 = arith.constant 0 : i32
    return %c0_i32, %arg0, %c0_i32_0 : i32, i32, i32
  }
  func.func @transform_7(%arg0: i32) -> (i32, i32, i32) {
    %c0_i32 = arith.constant 0 : i32
    %c0_i32_0 = arith.constant 0 : i32
    %c0_i32_1 = arith.constant 0 : i32
    return %c0_i32, %arg0, %c0_i32_0 : i32, i32, i32
  }
}

</mosaic_0001>

<llo_original>
// kernel: tpu_custom_call.1
$region0: #{tpu_custom_call.1}
  #allocation0 [shape = 'u32[]', space=smem, size = 0x4, offset = 0x4, fixed_abs, tag = 'smem constant byte address 0x4 - core index']
  #allocation1 [shape = 'u32[144,128]{1,0:T(1,128)}', space=vmem, size = 0x12000, scoped, tag = 'internal scratch']
  %s0 = inlined_call_operand.vmem [shape: f32[2,4,256], index: 0, kind: input, shape index: {}]
  %s1 = inlined_call_operand.hbm [shape: f32[2,4,256], index: 1, kind: input, shape index: {}]
  %s2 = inlined_call_operand.vmem [shape: f32[1,4,1], index: 2, kind: input, shape index: {}]
  %s3 = inlined_call_operand.vmem [shape: f32[1,4,1], index: 3, kind: input, shape index: {}]
  %s4 = inlined_call_operand.vmem [shape: f32[1,4,1], index: 4, kind: input, shape index: {}]
  %s5 = inlined_call_operand.vmem [shape: f32[1,4,1], index: 5, kind: input, shape index: {}]
  %s6 = inlined_call_operand.hbm [shape: f32[2,4,256], index: 6, kind: output, shape index: {0}]
  %s7 = inlined_call_operand.hbm [shape: f32[2,4,256], index: 7, kind: output, shape index: {1}]
  %8 = xla_tuple %s6, %s7
  %s9 = sld [smem:[#allocation0]]
  $region46: #{tpu_custom_call.1} parent=0
    _
  %s11 = ssub.s32 1, %s9
  %s12 = scalar_select 0, %s11, %s9
  $region1: #{tpu_custom_call.1} parent=0
    #allocation2 [shape = 'u8[8192]{0}', space=vmem, size = 0x2000, scoped, tag = 'input window, operand 1, single buffered']
    #allocation3 [shape = 's32[1]{0}', space=sflag, size = 0x4, scoped, tag = 'scoped memory for tpu_custom_call.1']
    #allocation4 [shape = 's32[1]{0}', space=sflag, size = 0x4, scoped, tag = 'scoped memory for tpu_custom_call.1']
    #allocation5 [shape = 'u8[8192]{0}', space=vmem, size = 0x2000, scoped, tag = 'output window, operand 0, single buffered']
    #allocation6 [shape = 'u8[8192]{0}', space=vmem, size = 0x2000, scoped, tag = 'output window, operand 1, single buffered']
    #allocation7 [shape = 's32[1]{0}', space=sflag, size = 0x4, scoped, tag = 'scoped memory for tpu_custom_call.1']
    %13 = vsyncpa [#allocation3], 0
    %14 = vsyncpa [#allocation4], 0
    %15 = vsyncpa [#allocation7], 0
    // Predicated region
    $region2: #{tpu_custom_call.1} parent=1 // pred_check
      _
    $region3: #{tpu_custom_call.1} parent=1 // pred_check_branch
      %17 = sbr.rel (0) target = $region5
    $region4: #{tpu_custom_call.1} parent=1 // pred_region
      _
    $region5: #{tpu_custom_call.1} parent=1 // pred_fallthru
      _
    // Predicated region
    $region6: #{tpu_custom_call.1} parent=1 // pred_check
      _
    $region7: #{tpu_custom_call.1} parent=1 // pred_check_branch
      %19 = sbr.rel (0) target = $region9
    $region8: #{tpu_custom_call.1} parent=1 // pred_region
      %s21 = ssub.s32 256, 256
      %22 = vsyncadd [#allocation3], %s21
      %s23 = sshll.u32 [#allocation2], 4
      %s24 = int_to_ptr.vmem [resolvable:$true] %s23
      %29 = dma.hbm_to_vmem [thread:$0]  %s1, 256, %s24, [#allocation3], 128, 128, 8
    $region9: #{tpu_custom_call.1} parent=1 // pred_fallthru
      _
    // Predicated region
    $region10: #{tpu_custom_call.1} parent=1 // pred_check
      _
    $region11: #{tpu_custom_call.1} parent=1 // pred_check_branch
      %31 = sbr.rel (0) target = $region13
    $region12: #{tpu_custom_call.1} parent=1 // pred_region
      _
    $region13: #{tpu_custom_call.1} parent=1 // pred_fallthru
      _
    // Predicated region
    $region14: #{tpu_custom_call.1} parent=1 // pred_check
      _
    $region15: #{tpu_custom_call.1} parent=1 // pred_check_branch
      %33 = sbr.rel (0) target = $region17
    $region16: #{tpu_custom_call.1} parent=1 // pred_region
      _
    $region17: #{tpu_custom_call.1} parent=1 // pred_fallthru
      _
    // Predicated region
    $region18: #{tpu_custom_call.1} parent=1 // pred_check
      _
    $region19: #{tpu_custom_call.1} parent=1 // pred_check_branch
      %35 = sbr.rel (0) target = $region21
    $region20: #{tpu_custom_call.1} parent=1 // pred_region
      _
    $region21: #{tpu_custom_call.1} parent=1 // pred_fallthru
      _
    // Predicated region
    $region22: #{tpu_custom_call.1} parent=1 // pred_check
      _
    $region23: #{tpu_custom_call.1} parent=1 // pred_check_branch
      %37 = sbr.rel (0) target = $region25
    $region24: #{tpu_custom_call.1} parent=1 // pred_region
      _
    $region25: #{tpu_custom_call.1} parent=1 // pred_fallthru
      _
    // Predicated region
    $region26: #{tpu_custom_call.1} parent=1 // pred_check
      _
    $region27: #{tpu_custom_call.1} parent=1 // pred_check_branch
      %39 = sbr.rel (0) target = $region29
    $region28: #{tpu_custom_call.1} parent=1 // pred_region
      %40 = dma.done [#allocation3], 256
    $region29: #{tpu_custom_call.1} parent=1 // pred_fallthru
      _
    %v41 = vld [vmem:[%s0] sm:$0xff]
    %v42 = vld [vmem:[%s0 + $0x8] sm:$0xff]
    %v45 = vcombine.high %v41, %v41
    %v46 = vcombine.high %v42, %v42
    %vm49 = vcmask 1043456
    %v50 = vsel %vm49, %v41, 0.0
    %v51 = vsel %vm49, %v45, 0.0
    %v52 = vadd.f32 %v50, %v51
    %53 = vadd.xlane.f32.xlu0 %v52
    %v54 = vpop.xlane.xlu0 %53
    %v55 = vsel %vm49, %v42, 0.0
    %v56 = vsel %vm49, %v46, 0.0
    %v57 = vadd.f32 %v55, %v56
    %58 = vadd.xlane.f32.xlu0 %v57
    %v59 = vpop.xlane.xlu0 %58
    %v60 = vsel %vm49, %v54, 0.0
    %v61 = vsel %vm49, %v59, 0.0
    %v62 = vadd.f32 %v60, %v61
    %v63 = vmul.f32 %v41, %v41
    %v64 = vmul.f32 %v42, %v42
    %v67 = vcombine.high %v63, %v63
    %v68 = vcombine.high %v64, %v64
    %v71 = vsel %vm49, %v63, 0.0
    %v72 = vsel %vm49, %v67, 0.0
    %v73 = vadd.f32 %v71, %v72
    %74 = vadd.xlane.f32.xlu0 %v73
    %v75 = vpop.xlane.xlu0 %74
    %v76 = vsel %vm49, %v64, 0.0
    %v77 = vsel %vm49, %v68, 0.0
    %v78 = vadd.f32 %v76, %v77
    %79 = vadd.xlane.f32.xlu0 %v78
    %v80 = vpop.xlane.xlu0 %79
    %v81 = vsel %vm49, %v75, 0.0
    %v82 = vsel %vm49, %v80, 0.0
    %v83 = vadd.f32 %v81, %v82
    %v84 = vmul.f32 %v62, 0.001953125
    %v85 = vmul.f32 %v83, 0.001953125
    %v86 = vmul.f32 %v84, %v84
    %v87 = vsub.f32 %v85, %v86
    %v88 = vmax.f32 %v87, 0.0
    %v89 = vadd.f32 %v88, 1e-05
    %v90 = vrsqrt.pop %v89
    %v91 = vld [vmem:[%s2] sm:$0xf]
    %v92 = vmul.f32 %v90, %v91
    %v93 = vld [vmem:[%s3] sm:$0xf]
    %v94 = vmul.f32 %v84, %v92
    %v95 = vsub.f32 %v93, %v94
    %97 = vset.pattern.permute.xlu0 0
    %98 = vperm.xlu0 %97, %v92
    %v99 = vpop.permute.xlu0 %98
    %v101 = vunpack.c.l.s4 839922192
    %v102 = vunpack.c.0.s8 %v101
    %v103 = vlaneseq
    %v104 = vshrl.u32 %v103, 7
    %v105 = vsub.s32 %v102, %v104
    %v106 = vrot.slane %v99, %v105
    %v108 = vmul.f32 %v41, %v106
    %v109 = vmul.f32 %v42, %v106
    %111 = vset.pattern.permute.xlu0 0
    %112 = vperm.xlu0 %111, %v95
    %v113 = vpop.permute.xlu0 %112
    %v115 = vunpack.c.l.s4 839922192
    %v116 = vunpack.c.0.s8 %v115
    %v117 = vlaneseq
    %v118 = vshrl.u32 %v117, 7
    %v119 = vsub.s32 %v116, %v118
    %v120 = vrot.slane %v113, %v119
    %v122 = vadd.f32 %v108, %v120
    %v123 = vadd.f32 %v109, %v120
    %124 = vst [vmem:[#allocation5] sm:$0xff] %v122
    %125 = vst [vmem:[#allocation5 + $0x8] sm:$0xff] %v123
    %v126 = vld [vmem:[#allocation2] sm:$0xff]
    %v127 = vld [vmem:[#allocation2 + $0x8] sm:$0xff]
    %v130 = vcombine.high %v126, %v126
    %v131 = vcombine.high %v127, %v127
    %v134 = vsel %vm49, %v126, 0.0
    %v135 = vsel %vm49, %v130, 0.0
    %v136 = vadd.f32 %v134, %v135
    %137 = vadd.xlane.f32.xlu0 %v136
    %v138 = vpop.xlane.xlu0 %137
    %v139 = vsel %vm49, %v127, 0.0
    %v140 = vsel %vm49, %v131, 0.0
    %v141 = vadd.f32 %v139, %v140
    %142 = vadd.xlane.f32.xlu0 %v141
    %v143 = vpop.xlane.xlu0 %142
    %v144 = vsel %vm49, %v138, 0.0
    %v145 = vsel %vm49, %v143, 0.0
    %v146 = vadd.f32 %v144, %v145
    %v147 = vmul.f32 %v126, %v126
    %v148 = vmul.f32 %v127, %v127
    %v151 = vcombine.high %v147, %v147
    %v152 = vcombine.high %v148, %v148
    %v155 = vsel %vm49, %v147, 0.0
    %v156 = vsel %vm49, %v151, 0.0
    %v157 = vadd.f32 %v155, %v156
    %158 = vadd.xlane.f32.xlu0 %v157
    %v159 = vpop.xlane.xlu0 %158
    %v160 = vsel %vm49, %v148, 0.0
    %v161 = vsel %vm49, %v152, 0.0
    %v162 = vadd.f32 %v160, %v161
    %163 = vadd.xlane.f32.xlu0 %v162
    %v164 = vpop.xlane.xlu0 %163
    %v165 = vsel %vm49, %v159, 0.0
    %v166 = vsel %vm49, %v164, 0.0
    %v167 = vadd.f32 %v165, %v166
    %v168 = vmul.f32 %v146, 0.001953125
    %v169 = vmul.f32 %v167, 0.001953125
    %v170 = vmul.f32 %v168, %v168
    %v171 = vsub.f32 %v169, %v170
    %v172 = vmax.f32 %v171, 0.0
    %v173 = vadd.f32 %v172, 1e-05
    %v174 = vrsqrt.pop %v173
    %v175 = vld [vmem:[%s4] sm:$0xf]
    %v176 = vmul.f32 %v174, %v175
    %v177 = vld [vmem:[%s5] sm:$0xf]
    %v178 = vmul.f32 %v168, %v176
    %v179 = vsub.f32 %v177, %v178
    %181 = vset.pattern.permute.xlu0 0
    %182 = vperm.xlu0 %181, %v176
    %v183 = vpop.permute.xlu0 %182
    %v185 = vunpack.c.l.s4 839922192
    %v186 = vunpack.c.0.s8 %v185
    %v187 = vlaneseq
    %v188 = vshrl.u32 %v187, 7
    %v189 = vsub.s32 %v186, %v188
    %v190 = vrot.slane %v183, %v189
    %v192 = vmul.f32 %v126, %v190
    %v193 = vmul.f32 %v127, %v190
    %195 = vset.pattern.permute.xlu0 0
    %196 = vperm.xlu0 %195, %v179
    %v197 = vpop.permute.xlu0 %196
    %v199 = vunpack.c.l.s4 839922192
    %v200 = vunpack.c.0.s8 %v199
    %v201 = vlaneseq
    %v202 = vshrl.u32 %v201, 7
    %v203 = vsub.s32 %v200, %v202
    %v204 = vrot.slane %v197, %v203
    %v206 = vadd.f32 %v192, %v204
    %v207 = vadd.f32 %v193, %v204
    %208 = vst [vmem:[#allocation6] sm:$0xff] %v206
    %209 = vst [vmem:[#allocation6 + $0x8] sm:$0xff] %v207
    // Predicated region
    $region30: #{tpu_custom_call.1} parent=1 // pred_check
      _
    $region31: #{tpu_custom_call.1} parent=1 // pred_check_branch
      %211 = sbr.rel (0) target = $region33
    $region32: #{tpu_custom_call.1} parent=1 // pred_region
      %s213 = ssub.s32 256, 256
      %214 = vsyncadd [#allocation4], %s213
      %s215 = sshll.u32 [#allocation5], 4
      %s216 = int_to_ptr.vmem [resolvable:$true] %s215
      %221 = dma.vmem_to_hbm [thread:$0]  %s216, 256, %s6, [#allocation4], 128, 128, 8
    $region33: #{tpu_custom_call.1} parent=1 // pred_fallthru
      _
    // Predicated region
    $region34: #{tpu_custom_call.1} parent=1 // pred_check
      _
    $region35: #{tpu_custom_call.1} parent=1 // pred_check_branch
      %223 = sbr.rel (0) target = $region37
    $region36: #{tpu_custom_call.1} parent=1 // pred_region
      %s225 = ssub.s32 256, 256
      %226 = vsyncadd [#allocation7], %s225
      %s227 = sshll.u32 [#allocation6], 4
      %s228 = int_to_ptr.vmem [resolvable:$true] %s227
      %233 = dma.vmem_to_hbm [thread:$0]  %s228, 256, %s7, [#allocation7], 128, 128, 8
    $region37: #{tpu_custom_call.1} parent=1 // pred_fallthru
      _
    // Predicated region
    $region38: #{tpu_custom_call.1} parent=1 // pred_check
      _
    $region39: #{tpu_custom_call.1} parent=1 // pred_check_branch
      %235 = sbr.rel (0) target = $region41
    $region40: #{tpu_custom_call.1} parent=1 // pred_region
      %236 = dma.done [#allocation4], 256
    $region41: #{tpu_custom_call.1} parent=1 // pred_fallthru
      _
    // Predicated region
    $region42: #{tpu_custom_call.1} parent=1 // pred_check
      _
    $region43: #{tpu_custom_call.1} parent=1 // pred_check_branch
      %238 = sbr.rel (0) target = $region45
    $region44: #{tpu_custom_call.1} parent=1 // pred_region
      %239 = dma.done [#allocation7], 256
    $region45: #{tpu_custom_call.1} parent=1 // pred_fallthru
      _
    %240 = vsyncpa [#allocation3], 1
    %241 = vsyncpa [#allocation4], 1
    %242 = vsyncpa [#allocation7], 1

</llo_original>
